<compile_context>
chip_gen: v5e
topology: v5e:2x2
jax: 0.10.0
libtpu: 0.0.40
codegen_flags: <defaults>
</compile_context>

<pallas_src>
import functools

import jax
import jax.numpy as jnp
from jax import lax
from jax.experimental import pallas as pl
from jax.experimental.pallas import tpu as pltpu

# fixed "club layout" graph from the module (4 rooms)
CLUB_LAYOUT = jnp.array(
    [[0, 1, 1, 1],
     [1, 0, 0, 0],
     [1, 0, 0, 1],
     [1, 0, 1, 0]], dtype=jnp.float32)

NUM_STEPS = 3          # time_steps=4 -> 3 RK4 intervals
DT = 1.0 / NUM_STEPS   # linspace(0, 1, 4) spacing


def _ode_kernel(ahat_ref, h0_ref, w_ref, b_ref, out_ref, *, n, d, num_steps, dt):
    """Full fixed-step RK4 integration of dh/dt = tanh(Ahat H W^T + b).

    ahat_ref : (n*n,)   f32 SMEM  row-major flattened normalized adjacency
    h0_ref   : (1, n*d) f32 VMEM  row-major flattened node state (lane-dense)
    w_ref    : (d, d)   f32 VMEM  PyTorch-Linear-style weight (out, in)
    b_ref    : (1, d)   f32 VMEM  bias
    out_ref  : (1, n*d) f32 VMEM  flattened h(t=1)
    """
    # ---- one-time operator build (off the serial RK4 critical path) --------
    # Kt = kron(Ahat^T, W^T)  so that  vec_r(Ahat H W^T) == vec_r(H) @ Kt.
    # Block (i, j) of Kt is Ahat[j, i] * W^T; built from 16 SMEM scalars and a
    # single 32x32 transpose, kept entirely in vregs (bf16 Kt = 8 vregs).
    wt = w_ref[...].T                                            # (d, d) f32
    row_slabs = []
    for i in range(n):
        blocks = [ahat_ref[j * n + i] * wt for j in range(n)]    # Ahat[j, i] * W^T
        row_slabs.append(jnp.concatenate(blocks, axis=1))        # (d, n*d)
    kt = jnp.concatenate(row_slabs, axis=0).astype(jnp.bfloat16)  # (n*d, n*d) bf16
    b_full = jnp.concatenate([b_ref[...]] * n, axis=1)           # (1, n*d) f32

    def f(h):
        # bf16 x bf16 -> single-pass MXU; f32 accumulation; f32 bias + EUP tanh
        s = jnp.dot(h.astype(jnp.bfloat16), kt,
                    preferred_element_type=jnp.float32)
        return jnp.tanh(s + b_full)

    def rk4_step(_, h):
        k1 = f(h)
        k2 = f(h + (0.5 * dt) * k1)
        k3 = f(h + (0.5 * dt) * k2)
        k4 = f(h + dt * k3)
        return h + (dt / 6.0) * (k1 + 2.0 * k2 + 2.0 * k3 + k4)

    out_ref[...] = lax.fori_loop(0, num_steps, rk4_step, h0_ref[...],
                                 unroll=True)


@jax.jit
def v1_graph_ode_forward(initial_vibe, ahat, w, b):
    """initial_vibe: (N, D); ahat: (N, N); w: (D, D) PyTorch Linear (out, in); b: (D,)."""
    n, d = initial_vibe.shape
    nd = n * d

    kernel = functools.partial(_ode_kernel, n=n, d=d,
                               num_steps=NUM_STEPS, dt=DT)
    vmem = pltpu.MemorySpace.VMEM
    smem = pltpu.MemorySpace.SMEM

    out_flat = pl.pallas_call(
        kernel,
        out_shape=jax.ShapeDtypeStruct((1, nd), jnp.float32),
        in_specs=[
            pl.BlockSpec(memory_space=smem),   # ahat, flattened scalars
            pl.BlockSpec(memory_space=vmem),   # h0 (1, nd)
            pl.BlockSpec(memory_space=vmem),   # w  (d, d)
            pl.BlockSpec(memory_space=vmem),   # b  (1, d)
        ],
        out_specs=pl.BlockSpec(memory_space=vmem),
    )(
        ahat.astype(jnp.float32).reshape(n * n),
        initial_vibe.astype(jnp.float32).reshape(1, nd),
        w.astype(jnp.float32),
        b.astype(jnp.float32).reshape(1, d),
    )
    return out_flat.reshape(n, d)


def make_gcn_norm_adj(adj):
    """Ahat = D~^{-1/2} (A + I) D~^{-1/2}, matching PyG GCNConv defaults."""
    n = adj.shape[0]
    a_tilde = adj + jnp.eye(n, dtype=adj.dtype)
    deg = jnp.sum(a_tilde, axis=1)
    d_inv_sqrt = 1.0 / jnp.sqrt(deg)
    return a_tilde * d_inv_sqrt[:, None] * d_inv_sqrt[None, :]


def pure_f32_reference(initial_vibe, ahat, w, b):
    """Module math in plain f32 (two dots per eval, no bf16)."""
    def f(h):
        return jnp.tanh(ahat @ (h @ w.T) + b[None, :])

    h = initial_vibe
    for _ in range(NUM_STEPS):
        k1 = f(h)
        k2 = f(h + 0.5 * DT * k1)
        k3 = f(h + 0.5 * DT * k2)
        k4 = f(h + DT * k3)
        h = h + (DT / 6.0) * (k1 + 2.0 * k2 + 2.0 * k3 + k4)
    return h


def bf16_mirror_reference(initial_vibe, ahat, w, b):
    """Pure-JAX mirror of exactly what the kernel computes (kron-fused, bf16 MXU operands)."""
    n, d = initial_vibe.shape
    nd = n * d
    kt = jnp.kron(ahat.T, w.T).astype(jnp.bfloat16)
    b_full = jnp.tile(b.astype(jnp.float32), n).reshape(1, nd)
    h = initial_vibe.astype(jnp.float32).reshape(1, nd)

    def f(x):
        s = jnp.dot(x.astype(jnp.bfloat16), kt, preferred_element_type=jnp.float32)
        return jnp.tanh(s + b_full)

    for _ in range(NUM_STEPS):
        k1 = f(h)
        k2 = f(h + 0.5 * DT * k1)
        k3 = f(h + 0.5 * DT * k2)
        k4 = f(h + DT * k3)
        h = h + (DT / 6.0) * (k1 + 2.0 * k2 + 2.0 * k3 + k4)
    return h.reshape(n, d)


if __name__ == "__main__":
    vibe_dim = 32
    num_nodes = CLUB_LAYOUT.shape[0]   # 4 rooms in the club graph

    key = jax.random.PRNGKey(0)
    k_h, k_w, k_b = jax.random.split(key, 3)

    # initial node "vibes": (num_nodes, vibe_dim)
    initial_vibe = jax.random.normal(k_h, (num_nodes, vibe_dim), dtype=jnp.float32)

    # GCNConv parameters (glorot-uniform weight; small non-zero bias so the
    # in-kernel bias-tiling path is actually exercised — PyG init would be 0)
    limit = jnp.sqrt(6.0 / (vibe_dim + vibe_dim))
    w = jax.random.uniform(k_w, (vibe_dim, vibe_dim), dtype=jnp.float32,
                           minval=-limit, maxval=limit)
    b = 0.1 * jax.random.normal(k_b, (vibe_dim,), dtype=jnp.float32)

    ahat = make_gcn_norm_adj(CLUB_LAYOUT)

    out = v1_graph_ode_forward(initial_vibe, ahat, w, b)
    out = jax.block_until_ready(out)
    assert out.shape == (num_nodes, vibe_dim)

    # 1) Tight check vs an exact bf16-mirrored JAX reference (validates kernel).
    ref_mirror = bf16_mirror_reference(initial_vibe, ahat, w, b)
    assert jnp.allclose(out, ref_mirror, atol=5e-4, rtol=5e-4), \
        "mismatch vs bf16-mirrored reference"

    # 2) Loose check vs the pure-f32 module math (bf16 MXU operands drift a
    #    little over 12 serial f-evals).
    ref_f32 = pure_f32_reference(initial_vibe, ahat, w, b)
    assert jnp.allclose(out, ref_f32, atol=5e-2, rtol=5e-2), \
        "mismatch vs f32 module reference"

    print("KERNEL_OK")
</pallas_src>

<mosaic_0001>
module attributes {stable_mosaic.version = 11 : i64} {
  func.func @_ode_kernel(%arg0: memref<16xf32, #tpu.memory_space<smem>>, %arg1: memref<1x128xf32, #tpu.memory_space<vmem>>, %arg2: memref<32x32xf32, #tpu.memory_space<vmem>>, %arg3: memref<1x32xf32, #tpu.memory_space<vmem>>, %arg4: memref<1x128xf32, #tpu.memory_space<vmem>>) attributes {dimension_semantics = [], scalar_prefetch = 0 : i64, scratch_operands = 0 : i64, tpu.core_type = #tpu.core_type<tc>} {
    %c0 = arith.constant 0 : index
    %c0_0 = arith.constant 0 : index
    %0 = vector.load %arg2[%c0, %c0_0] : memref<32x32xf32, #tpu.memory_space<vmem>>, vector<32x32xf32>
    %1 = tpu.transpose %0, [1, 0] : vector<32x32xf32> -> vector<32x32xf32>
    %c0_1 = arith.constant 0 : index
    %2 = memref.load %arg0[%c0_1] : memref<16xf32, #tpu.memory_space<smem>>
    %3 = vector.broadcast %2 : f32 to vector<32x32xf32>
    %4 = arith.mulf %3, %1 : vector<32x32xf32>
    %c4 = arith.constant 4 : index
    %5 = memref.load %arg0[%c4] : memref<16xf32, #tpu.memory_space<smem>>
    %6 = vector.broadcast %5 : f32 to vector<32x32xf32>
    %7 = arith.mulf %6, %1 : vector<32x32xf32>
    %c8 = arith.constant 8 : index
    %8 = memref.load %arg0[%c8] : memref<16xf32, #tpu.memory_space<smem>>
    %9 = vector.broadcast %8 : f32 to vector<32x32xf32>
    %10 = arith.mulf %9, %1 : vector<32x32xf32>
    %c12 = arith.constant 12 : index
    %11 = memref.load %arg0[%c12] : memref<16xf32, #tpu.memory_space<smem>>
    %12 = vector.broadcast %11 : f32 to vector<32x32xf32>
    %13 = arith.mulf %12, %1 : vector<32x32xf32>
    %14 = tpu.concatenate %4, %7, %10, %13 in 1 : vector<32x32xf32>, vector<32x32xf32>, vector<32x32xf32>, vector<32x32xf32> -> vector<32x128xf32>
    %c1 = arith.constant 1 : index
    %15 = memref.load %arg0[%c1] : memref<16xf32, #tpu.memory_space<smem>>
    %16 = vector.broadcast %15 : f32 to vector<32x32xf32>
    %17 = arith.mulf %16, %1 : vector<32x32xf32>
    %c5 = arith.constant 5 : index
    %18 = memref.load %arg0[%c5] : memref<16xf32, #tpu.memory_space<smem>>
    %19 = vector.broadcast %18 : f32 to vector<32x32xf32>
    %20 = arith.mulf %19, %1 : vector<32x32xf32>
    %c9 = arith.constant 9 : index
    %21 = memref.load %arg0[%c9] : memref<16xf32, #tpu.memory_space<smem>>
    %22 = vector.broadcast %21 : f32 to vector<32x32xf32>
    %23 = arith.mulf %22, %1 : vector<32x32xf32>
    %c13 = arith.constant 13 : index
    %24 = memref.load %arg0[%c13] : memref<16xf32, #tpu.memory_space<smem>>
    %25 = vector.broadcast %24 : f32 to vector<32x32xf32>
    %26 = arith.mulf %25, %1 : vector<32x32xf32>
    %27 = tpu.concatenate %17, %20, %23, %26 in 1 : vector<32x32xf32>, vector<32x32xf32>, vector<32x32xf32>, vector<32x32xf32> -> vector<32x128xf32>
    %c2 = arith.constant 2 : index
    %28 = memref.load %arg0[%c2] : memref<16xf32, #tpu.memory_space<smem>>
    %29 = vector.broadcast %28 : f32 to vector<32x32xf32>
    %30 = arith.mulf %29, %1 : vector<32x32xf32>
    %c6 = arith.constant 6 : index
    %31 = memref.load %arg0[%c6] : memref<16xf32, #tpu.memory_space<smem>>
    %32 = vector.broadcast %31 : f32 to vector<32x32xf32>
    %33 = arith.mulf %32, %1 : vector<32x32xf32>
    %c10 = arith.constant 10 : index
    %34 = memref.load %arg0[%c10] : memref<16xf32, #tpu.memory_space<smem>>
    %35 = vector.broadcast %34 : f32 to vector<32x32xf32>
    %36 = arith.mulf %35, %1 : vector<32x32xf32>
    %c14 = arith.constant 14 : index
    %37 = memref.load %arg0[%c14] : memref<16xf32, #tpu.memory_space<smem>>
    %38 = vector.broadcast %37 : f32 to vector<32x32xf32>
    %39 = arith.mulf %38, %1 : vector<32x32xf32>
    %40 = tpu.concatenate %30, %33, %36, %39 in 1 : vector<32x32xf32>, vector<32x32xf32>, vector<32x32xf32>, vector<32x32xf32> -> vector<32x128xf32>
    %c3 = arith.constant 3 : index
    %41 = memref.load %arg0[%c3] : memref<16xf32, #tpu.memory_space<smem>>
    %42 = vector.broadcast %41 : f32 to vector<32x32xf32>
    %43 = arith.mulf %42, %1 : vector<32x32xf32>
    %c7 = arith.constant 7 : index
    %44 = memref.load %arg0[%c7] : memref<16xf32, #tpu.memory_space<smem>>
    %45 = vector.broadcast %44 : f32 to vector<32x32xf32>
    %46 = arith.mulf %45, %1 : vector<32x32xf32>
    %c11 = arith.constant 11 : index
    %47 = memref.load %arg0[%c11] : memref<16xf32, #tpu.memory_space<smem>>
    %48 = vector.broadcast %47 : f32 to vector<32x32xf32>
    %49 = arith.mulf %48, %1 : vector<32x32xf32>
    %c15 = arith.constant 15 : index
    %50 = memref.load %arg0[%c15] : memref<16xf32, #tpu.memory_space<smem>>
    %51 = vector.broadcast %50 : f32 to vector<32x32xf32>
    %52 = arith.mulf %51, %1 : vector<32x32xf32>
    %53 = tpu.concatenate %43, %46, %49, %52 in 1 : vector<32x32xf32>, vector<32x32xf32>, vector<32x32xf32>, vector<32x32xf32> -> vector<32x128xf32>
    %54 = tpu.concatenate %14, %27, %40, %53 in 0 : vector<32x128xf32>, vector<32x128xf32>, vector<32x128xf32>, vector<32x128xf32> -> vector<128x128xf32>
    %55 = arith.truncf %54 : vector<128x128xf32> to vector<128x128xbf16>
    %c0_2 = arith.constant 0 : index
    %c0_3 = arith.constant 0 : index
    %56 = vector.load %arg3[%c0_2, %c0_3] : memref<1x32xf32, #tpu.memory_space<vmem>>, vector<1x32xf32>
    %57 = tpu.concatenate %56, %56, %56, %56 in 1 : vector<1x32xf32>, vector<1x32xf32>, vector<1x32xf32>, vector<1x32xf32> -> vector<1x128xf32>
    %c0_4 = arith.constant 0 : index
    %c0_5 = arith.constant 0 : index
    %58 = vector.load %arg1[%c0_4, %c0_5] : memref<1x128xf32, #tpu.memory_space<vmem>>, vector<1x128xf32>
    %c0_i32 = arith.constant 0 : i32
    %59 = arith.truncf %58 : vector<1x128xf32> to vector<1x128xbf16>
    %cst = arith.constant dense<0.000000e+00> : vector<1x128xf32>
    %60 = tpu.matmul %59, %55, %cst {dimension_numbers = #tpu.dot_dimension_numbers<[1], [0], [0], [1], [0, 0, 1, 1], [], []>} : vector<1x128xbf16>, vector<128x128xbf16>, vector<1x128xf32> -> vector<1x128xf32>
    %61 = arith.addf %60, %57 : vector<1x128xf32>
    %62 = math.tanh %61 : vector<1x128xf32>
    %cst_6 = arith.constant 0.166666672 : f32
    %63 = vector.broadcast %cst_6 : f32 to vector<1x128xf32>
    %64 = arith.mulf %63, %62 : vector<1x128xf32>
    %65 = arith.addf %58, %64 : vector<1x128xf32>
    %66 = arith.truncf %65 : vector<1x128xf32> to vector<1x128xbf16>
    %cst_7 = arith.constant dense<0.000000e+00> : vector<1x128xf32>
    %67 = tpu.matmul %66, %55, %cst_7 {dimension_numbers = #tpu.dot_dimension_numbers<[1], [0], [0], [1], [0, 0, 1, 1], [], []>} : vector<1x128xbf16>, vector<128x128xbf16>, vector<1x128xf32> -> vector<1x128xf32>
    %68 = arith.addf %67, %57 : vector<1x128xf32>
    %69 = math.tanh %68 : vector<1x128xf32>
    %cst_8 = arith.constant 0.166666672 : f32
    %70 = vector.broadcast %cst_8 : f32 to vector<1x128xf32>
    %71 = arith.mulf %70, %69 : vector<1x128xf32>
    %72 = arith.addf %58, %71 : vector<1x128xf32>
    %73 = arith.truncf %72 : vector<1x128xf32> to vector<1x128xbf16>
    %cst_9 = arith.constant dense<0.000000e+00> : vector<1x128xf32>
    %74 = tpu.matmul %73, %55, %cst_9 {dimension_numbers = #tpu.dot_dimension_numbers<[1], [0], [0], [1], [0, 0, 1, 1], [], []>} : vector<1x128xbf16>, vector<128x128xbf16>, vector<1x128xf32> -> vector<1x128xf32>
    %75 = arith.addf %74, %57 : vector<1x128xf32>
    %76 = math.tanh %75 : vector<1x128xf32>
    %cst_10 = arith.constant 0.333333343 : f32
    %77 = vector.broadcast %cst_10 : f32 to vector<1x128xf32>
    %78 = arith.mulf %77, %76 : vector<1x128xf32>
    %79 = arith.addf %58, %78 : vector<1x128xf32>
    %80 = arith.truncf %79 : vector<1x128xf32> to vector<1x128xbf16>
    %cst_11 = arith.constant dense<0.000000e+00> : vector<1x128xf32>
    %81 = tpu.matmul %80, %55, %cst_11 {dimension_numbers = #tpu.dot_dimension_numbers<[1], [0], [0], [1], [0, 0, 1, 1], [], []>} : vector<1x128xbf16>, vector<128x128xbf16>, vector<1x128xf32> -> vector<1x128xf32>
    %82 = arith.addf %81, %57 : vector<1x128xf32>
    %83 = math.tanh %82 : vector<1x128xf32>
    %cst_12 = arith.constant 2.000000e+00 : f32
    %84 = vector.broadcast %cst_12 : f32 to vector<1x128xf32>
    %85 = arith.mulf %84, %69 : vector<1x128xf32>
    %86 = arith.addf %62, %85 : vector<1x128xf32>
    %cst_13 = arith.constant 2.000000e+00 : f32
    %87 = vector.broadcast %cst_13 : f32 to vector<1x128xf32>
    %88 = arith.mulf %87, %76 : vector<1x128xf32>
    %89 = arith.addf %86, %88 : vector<1x128xf32>
    %90 = arith.addf %89, %83 : vector<1x128xf32>
    %cst_14 = arith.constant 0.055555556 : f32
    %91 = vector.broadcast %cst_14 : f32 to vector<1x128xf32>
    %92 = arith.mulf %91, %90 : vector<1x128xf32>
    %93 = arith.addf %58, %92 : vector<1x128xf32>
    %c1_i32 = arith.constant 1 : i32
    %94 = arith.truncf %93 : vector<1x128xf32> to vector<1x128xbf16>
    %cst_15 = arith.constant dense<0.000000e+00> : vector<1x128xf32>
    %95 = tpu.matmul %94, %55, %cst_15 {dimension_numbers = #tpu.dot_dimension_numbers<[1], [0], [0], [1], [0, 0, 1, 1], [], []>} : vector<1x128xbf16>, vector<128x128xbf16>, vector<1x128xf32> -> vector<1x128xf32>
    %96 = arith.addf %95, %57 : vector<1x128xf32>
    %97 = math.tanh %96 : vector<1x128xf32>
    %cst_16 = arith.constant 0.166666672 : f32
    %98 = vector.broadcast %cst_16 : f32 to vector<1x128xf32>
    %99 = arith.mulf %98, %97 : vector<1x128xf32>
    %100 = arith.addf %93, %99 : vector<1x128xf32>
    %101 = arith.truncf %100 : vector<1x128xf32> to vector<1x128xbf16>
    %cst_17 = arith.constant dense<0.000000e+00> : vector<1x128xf32>
    %102 = tpu.matmul %101, %55, %cst_17 {dimension_numbers = #tpu.dot_dimension_numbers<[1], [0], [0], [1], [0, 0, 1, 1], [], []>} : vector<1x128xbf16>, vector<128x128xbf16>, vector<1x128xf32> -> vector<1x128xf32>
    %103 = arith.addf %102, %57 : vector<1x128xf32>
    %104 = math.tanh %103 : vector<1x128xf32>
    %cst_18 = arith.constant 0.166666672 : f32
    %105 = vector.broadcast %cst_18 : f32 to vector<1x128xf32>
    %106 = arith.mulf %105, %104 : vector<1x128xf32>
    %107 = arith.addf %93, %106 : vector<1x128xf32>
    %108 = arith.truncf %107 : vector<1x128xf32> to vector<1x128xbf16>
    %cst_19 = arith.constant dense<0.000000e+00> : vector<1x128xf32>
    %109 = tpu.matmul %108, %55, %cst_19 {dimension_numbers = #tpu.dot_dimension_numbers<[1], [0], [0], [1], [0, 0, 1, 1], [], []>} : vector<1x128xbf16>, vector<128x128xbf16>, vector<1x128xf32> -> vector<1x128xf32>
    %110 = arith.addf %109, %57 : vector<1x128xf32>
    %111 = math.tanh %110 : vector<1x128xf32>
    %cst_20 = arith.constant 0.333333343 : f32
    %112 = vector.broadcast %cst_20 : f32 to vector<1x128xf32>
    %113 = arith.mulf %112, %111 : vector<1x128xf32>
    %114 = arith.addf %93, %113 : vector<1x128xf32>
    %115 = arith.truncf %114 : vector<1x128xf32> to vector<1x128xbf16>
    %cst_21 = arith.constant dense<0.000000e+00> : vector<1x128xf32>
    %116 = tpu.matmul %115, %55, %cst_21 {dimension_numbers = #tpu.dot_dimension_numbers<[1], [0], [0], [1], [0, 0, 1, 1], [], []>} : vector<1x128xbf16>, vector<128x128xbf16>, vector<1x128xf32> -> vector<1x128xf32>
    %117 = arith.addf %116, %57 : vector<1x128xf32>
    %118 = math.tanh %117 : vector<1x128xf32>
    %cst_22 = arith.constant 2.000000e+00 : f32
    %119 = vector.broadcast %cst_22 : f32 to vector<1x128xf32>
    %120 = arith.mulf %119, %104 : vector<1x128xf32>
    %121 = arith.addf %97, %120 : vector<1x128xf32>
    %cst_23 = arith.constant 2.000000e+00 : f32
    %122 = vector.broadcast %cst_23 : f32 to vector<1x128xf32>
    %123 = arith.mulf %122, %111 : vector<1x128xf32>
    %124 = arith.addf %121, %123 : vector<1x128xf32>
    %125 = arith.addf %124, %118 : vector<1x128xf32>
    %cst_24 = arith.constant 0.055555556 : f32
    %126 = vector.broadcast %cst_24 : f32 to vector<1x128xf32>
    %127 = arith.mulf %126, %125 : vector<1x128xf32>
    %128 = arith.addf %93, %127 : vector<1x128xf32>
    %c2_i32 = arith.constant 2 : i32
    %129 = arith.truncf %128 : vector<1x128xf32> to vector<1x128xbf16>
    %cst_25 = arith.constant dense<0.000000e+00> : vector<1x128xf32>
    %130 = tpu.matmul %129, %55, %cst_25 {dimension_numbers = #tpu.dot_dimension_numbers<[1], [0], [0], [1], [0, 0, 1, 1], [], []>} : vector<1x128xbf16>, vector<128x128xbf16>, vector<1x128xf32> -> vector<1x128xf32>
    %131 = arith.addf %130, %57 : vector<1x128xf32>
    %132 = math.tanh %131 : vector<1x128xf32>
    %cst_26 = arith.constant 0.166666672 : f32
    %133 = vector.broadcast %cst_26 : f32 to vector<1x128xf32>
    %134 = arith.mulf %133, %132 : vector<1x128xf32>
    %135 = arith.addf %128, %134 : vector<1x128xf32>
    %136 = arith.truncf %135 : vector<1x128xf32> to vector<1x128xbf16>
    %cst_27 = arith.constant dense<0.000000e+00> : vector<1x128xf32>
    %137 = tpu.matmul %136, %55, %cst_27 {dimension_numbers = #tpu.dot_dimension_numbers<[1], [0], [0], [1], [0, 0, 1, 1], [], []>} : vector<1x128xbf16>, vector<128x128xbf16>, vector<1x128xf32> -> vector<1x128xf32>
    %138 = arith.addf %137, %57 : vector<1x128xf32>
    %139 = math.tanh %138 : vector<1x128xf32>
    %cst_28 = arith.constant 0.166666672 : f32
    %140 = vector.broadcast %cst_28 : f32 to vector<1x128xf32>
    %141 = arith.mulf %140, %139 : vector<1x128xf32>
    %142 = arith.addf %128, %141 : vector<1x128xf32>
    %143 = arith.truncf %142 : vector<1x128xf32> to vector<1x128xbf16>
    %cst_29 = arith.constant dense<0.000000e+00> : vector<1x128xf32>
    %144 = tpu.matmul %143, %55, %cst_29 {dimension_numbers = #tpu.dot_dimension_numbers<[1], [0], [0], [1], [0, 0, 1, 1], [], []>} : vector<1x128xbf16>, vector<128x128xbf16>, vector<1x128xf32> -> vector<1x128xf32>
    %145 = arith.addf %144, %57 : vector<1x128xf32>
    %146 = math.tanh %145 : vector<1x128xf32>
    %cst_30 = arith.constant 0.333333343 : f32
    %147 = vector.broadcast %cst_30 : f32 to vector<1x128xf32>
    %148 = arith.mulf %147, %146 : vector<1x128xf32>
    %149 = arith.addf %128, %148 : vector<1x128xf32>
    %150 = arith.truncf %149 : vector<1x128xf32> to vector<1x128xbf16>
    %cst_31 = arith.constant dense<0.000000e+00> : vector<1x128xf32>
    %151 = tpu.matmul %150, %55, %cst_31 {dimension_numbers = #tpu.dot_dimension_numbers<[1], [0], [0], [1], [0, 0, 1, 1], [], []>} : vector<1x128xbf16>, vector<128x128xbf16>, vector<1x128xf32> -> vector<1x128xf32>
    %152 = arith.addf %151, %57 : vector<1x128xf32>
    %153 = math.tanh %152 : vector<1x128xf32>
    %cst_32 = arith.constant 2.000000e+00 : f32
    %154 = vector.broadcast %cst_32 : f32 to vector<1x128xf32>
    %155 = arith.mulf %154, %139 : vector<1x128xf32>
    %156 = arith.addf %132, %155 : vector<1x128xf32>
    %cst_33 = arith.constant 2.000000e+00 : f32
    %157 = vector.broadcast %cst_33 : f32 to vector<1x128xf32>
    %158 = arith.mulf %157, %146 : vector<1x128xf32>
    %159 = arith.addf %156, %158 : vector<1x128xf32>
    %160 = arith.addf %159, %153 : vector<1x128xf32>
    %cst_34 = arith.constant 0.055555556 : f32
    %161 = vector.broadcast %cst_34 : f32 to vector<1x128xf32>
    %162 = arith.mulf %161, %160 : vector<1x128xf32>
    %163 = arith.addf %128, %162 : vector<1x128xf32>
    %c0_35 = arith.constant 0 : index
    %c0_36 = arith.constant 0 : index
    %164 = vector.load %arg4[%c0_35, %c0_36] : memref<1x128xf32, #tpu.memory_space<vmem>>, vector<1x128xf32>
    tpu.vector_store %arg4[%c0_35, %c0_36], %163 {strides = array<i32>} : memref<1x128xf32, #tpu.memory_space<vmem>>, vector<1x128xf32>,
    return
  }
}

</mosaic_0001>

<llo_original>
// kernel: v1_graph_ode_forward.1
$region0: #{v1_graph_ode_forward.1}
  #allocation0 [shape = 'u32[]', space=smem, size = 0x4, offset = 0x4, fixed_abs, tag = 'smem constant byte address 0x4 - core index']
  #allocation1 [shape = 'u32[72,128]{1,0:T(1,128)}', space=vmem, size = 0x9000, scoped, tag = 'internal scratch']
  %s0 = inlined_call_operand.vmem [shape: f32[16], index: 0, kind: input, shape index: {}]
  %s1 = inlined_call_operand.vmem [shape: f32[1,128], index: 1, kind: input, shape index: {}]
  %s2 = inlined_call_operand.hbm [shape: f32[32,32], index: 2, kind: input, shape index: {}]
  %s3 = inlined_call_operand.vmem [shape: f32[1,32], index: 3, kind: input, shape index: {}]
  %s4 = inlined_call_operand.vmem [shape: f32[1,128], index: 4, kind: output, shape index: {}]
  %s5 = sld [smem:[#allocation0]]
  $region34: #{v1_graph_ode_forward.1} parent=0
    _
  %s7 = ssub.s32 1, %s5
  %s8 = scalar_select 0, %s7, %s5
  $region1: #{v1_graph_ode_forward.1} parent=0
    #allocation2 [shape = 'u8[512]{0}', space=smem, size = 0x200, scoped, tag = 'input window, operand 0, single buffered']
    #allocation3 [shape = 's32[1]{0}', space=sflag, size = 0x4, scoped, tag = 'scoped memory for v1_graph_ode_forward.1']
    #allocation4 [shape = 's32[1]{0}', space=sflag, size = 0x4, scoped, tag = 'scoped memory for v1_graph_ode_forward.1']
    #allocation5 [shape = 'u8[16384]{0}', space=vmem, size = 0x4000, scoped, tag = 'input window, operand 2, single buffered']
    %9 = vsyncpa [#allocation4], 0
    %10 = vsyncpa [#allocation3], 0
    // Predicated region
    $region2: #{v1_graph_ode_forward.1} parent=1 // pred_check
      _
    $region3: #{v1_graph_ode_forward.1} parent=1 // pred_check_branch
      %12 = sbr.rel (0) target = $region5
    $region4: #{v1_graph_ode_forward.1} parent=1 // pred_region
      %14 = vsyncadd [#allocation4], 0
      %s16 = sshll.u32 %s0, 4
      %s17 = int_to_ptr.vmem [resolvable:$true] %s16
      %19 = dma.vmem_to_smem %s17, 16, [#allocation2], [#allocation4]
    $region5: #{v1_graph_ode_forward.1} parent=1 // pred_fallthru
      _
    // Predicated region
    $region6: #{v1_graph_ode_forward.1} parent=1 // pred_check
      _
    $region7: #{v1_graph_ode_forward.1} parent=1 // pred_check_branch
      %21 = sbr.rel (0) target = $region9
    $region8: #{v1_graph_ode_forward.1} parent=1 // pred_region
      _
    $region9: #{v1_graph_ode_forward.1} parent=1 // pred_fallthru
      _
    // Predicated region
    $region10: #{v1_graph_ode_forward.1} parent=1 // pred_check
      _
    $region11: #{v1_graph_ode_forward.1} parent=1 // pred_check_branch
      %23 = sbr.rel (0) target = $region13
    $region12: #{v1_graph_ode_forward.1} parent=1 // pred_region
      %25 = vsyncadd [#allocation3], 0
      %s26 = sshll.u32 %s2, 4
      %s27 = int_to_ptr.hbm [resolvable:$true] %s26
      %s28 = sshll.u32 [#allocation5], 4
      %s29 = int_to_ptr.vmem [resolvable:$true] %s28
      %34 = dma.hbm_to_vmem [thread:$0]  %s27, 512, %s29, [#allocation3], 128, 128, 8
    $region13: #{v1_graph_ode_forward.1} parent=1 // pred_fallthru
      _
    // Predicated region
    $region14: #{v1_graph_ode_forward.1} parent=1 // pred_check
      _
    $region15: #{v1_graph_ode_forward.1} parent=1 // pred_check_branch
      %36 = sbr.rel (0) target = $region17
    $region16: #{v1_graph_ode_forward.1} parent=1 // pred_region
      _
    $region17: #{v1_graph_ode_forward.1} parent=1 // pred_fallthru
      _
    // Predicated region
    $region18: #{v1_graph_ode_forward.1} parent=1 // pred_check
      _
    $region19: #{v1_graph_ode_forward.1} parent=1 // pred_check_branch
      %38 = sbr.rel (0) target = $region21
    $region20: #{v1_graph_ode_forward.1} parent=1 // pred_region
      %40 = dma.done [#allocation4], 16
    $region21: #{v1_graph_ode_forward.1} parent=1 // pred_fallthru
      _
    // Predicated region
    $region22: #{v1_graph_ode_forward.1} parent=1 // pred_check
      _
    $region23: #{v1_graph_ode_forward.1} parent=1 // pred_check_branch
      %42 = sbr.rel (0) target = $region25
    $region24: #{v1_graph_ode_forward.1} parent=1 // pred_region
      %44 = dma.done [#allocation3], 512
    $region25: #{v1_graph_ode_forward.1} parent=1 // pred_fallthru
      _
    %45 = sfence
    %v46 = vld [vmem:[#allocation5] sm:$0xff]
    %v47 = vld [vmem:[#allocation5 + $0x8] sm:$0xff]
    %v48 = vld [vmem:[#allocation5 + $0x10] sm:$0xff]
    %v49 = vld [vmem:[#allocation5 + $0x18] sm:$0xff]
    %50 = vxpose.xlu0.b32.start [1/16] %v46, 128
    %51 = vxpose.xlu0.b32.cont [2/16] %v47, 128
    %52 = vxpose.xlu0.b32.cont [3/16] %v48, 128
    %53 = vxpose.xlu0.b32.cont [4/16] %v49, 128
    %54 = vxpose.xlu0.b32.cont [5/16] 0.0, 128
    %55 = vxpose.xlu0.b32.cont [6/16] 0.0, 128
    %56 = vxpose.xlu0.b32.cont [7/16] 0.0, 128
    %57 = vxpose.xlu0.b32.cont [8/16] 0.0, 128
    %58 = vxpose.xlu0.b32.cont [9/16] 0.0, 128
    %59 = vxpose.xlu0.b32.cont [10/16] 0.0, 128
    %60 = vxpose.xlu0.b32.cont [11/16] 0.0, 128
    %61 = vxpose.xlu0.b32.cont [12/16] 0.0, 128
    %62 = vxpose.xlu0.b32.cont [13/16] 0.0, 128
    %63 = vxpose.xlu0.b32.cont [14/16] 0.0, 128
    %64 = vxpose.xlu0.b32.cont [15/16] 0.0, 128
    %65 = vxpose.xlu0.b32.end [16/16] 0.0, 128
    %v66 = vpop.trf.xlu0
    %v67 = vpop.trf.xlu0
    %v68 = vpop.trf.xlu0
    %v69 = vpop.trf.xlu0
    %v70 = vpop.trf.xlu0
    %v71 = vpop.trf.xlu0
    %v72 = vpop.trf.xlu0
    %v73 = vpop.trf.xlu0
    %v74 = vpop.trf.xlu0
    %v75 = vpop.trf.xlu0
    %v76 = vpop.trf.xlu0
    %v77 = vpop.trf.xlu0
    %v78 = vpop.trf.xlu0
    %v79 = vpop.trf.xlu0
    %v80 = vpop.trf.xlu0
    %v81 = vpop.trf.xlu0
    %s82 = sld [smem:[#allocation2]]
    %v83 = vstv %s82
    %v84 = vmul.f32 %v83, %v66
    %v85 = vmul.f32 %v83, %v67
    %v86 = vmul.f32 %v83, %v68
    %v87 = vmul.f32 %v83, %v69
    %s88 = sld [smem:[#allocation2 + $0x4]]
    %v89 = vstv %s88
    %v90 = vmul.f32 %v89, %v66
    %v91 = vmul.f32 %v89, %v67
    %v92 = vmul.f32 %v89, %v68
    %v93 = vmul.f32 %v89, %v69
    %s94 = sld [smem:[#allocation2 + $0x8]]
    %v95 = vstv %s94
    %v96 = vmul.f32 %v95, %v66
    %v97 = vmul.f32 %v95, %v67
    %v98 = vmul.f32 %v95, %v68
    %v99 = vmul.f32 %v95, %v69
    %s100 = sld [smem:[#allocation2 + $0xc]]
    %v101 = vstv %s100
    %v102 = vmul.f32 %v101, %v66
    %v103 = vmul.f32 %v101, %v67
    %v104 = vmul.f32 %v101, %v68
    %v105 = vmul.f32 %v101, %v69
    %110 = vrot.lane.b32.xlu0 %v90, 32
    %v111 = vpop.permute.xlu0 %110
    %112 = vrot.lane.b32.xlu0 %v91, 32
    %v113 = vpop.permute.xlu0 %112
    %114 = vrot.lane.b32.xlu0 %v92, 32
    %v115 = vpop.permute.xlu0 %114
    %116 = vrot.lane.b32.xlu0 %v93, 32
    %v117 = vpop.permute.xlu0 %116
    %126 = vrot.lane.b32.xlu0 %v96, 64
    %v127 = vpop.permute.xlu0 %126
    %128 = vrot.lane.b32.xlu0 %v97, 64
    %v129 = vpop.permute.xlu0 %128
    %130 = vrot.lane.b32.xlu0 %v98, 64
    %v131 = vpop.permute.xlu0 %130
    %132 = vrot.lane.b32.xlu0 %v99, 64
    %v133 = vpop.permute.xlu0 %132
    %142 = vrot.lane.b32.xlu0 %v102, 96
    %v143 = vpop.permute.xlu0 %142
    %144 = vrot.lane.b32.xlu0 %v103, 96
    %v145 = vpop.permute.xlu0 %144
    %146 = vrot.lane.b32.xlu0 %v104, 96
    %v147 = vpop.permute.xlu0 %146
    %148 = vrot.lane.b32.xlu0 %v105, 96
    %v149 = vpop.permute.xlu0 %148
    %vm154 = vcmask 261120
    %v155 = vsel %vm154, %v84, %v111
    %v156 = vsel %vm154, %v85, %v113
    %v157 = vsel %vm154, %v86, %v115
    %v158 = vsel %vm154, %v87, %v117
    %vm159 = vcmask 523264
    %v160 = vsel %vm159, %v155, %v127
    %v161 = vsel %vm159, %v156, %v129
    %v162 = vsel %vm159, %v157, %v131
    %v163 = vsel %vm159, %v158, %v133
    %vm164 = vcmask 785408
    %v165 = vsel %vm164, %v160, %v143
    %v166 = vsel %vm164, %v161, %v145
    %v167 = vsel %vm164, %v162, %v147
    %v168 = vsel %vm164, %v163, %v149
    %s169 = sld [smem:[#allocation2 + $0x1]]
    %v170 = vstv %s169
    %v171 = vmul.f32 %v170, %v66
    %v172 = vmul.f32 %v170, %v67
    %v173 = vmul.f32 %v170, %v68
    %v174 = vmul.f32 %v170, %v69
    %s175 = sld [smem:[#allocation2 + $0x5]]
    %v176 = vstv %s175
    %v177 = vmul.f32 %v176, %v66
    %v178 = vmul.f32 %v176, %v67
    %v179 = vmul.f32 %v176, %v68
    %v180 = vmul.f32 %v176, %v69
    %s181 = sld [smem:[#allocation2 + $0x9]]
    %v182 = vstv %s181
    %v183 = vmul.f32 %v182, %v66
    %v184 = vmul.f32 %v182, %v67
    %v185 = vmul.f32 %v182, %v68
    %v186 = vmul.f32 %v182, %v69
    %s187 = sld [smem:[#allocation2 + $0xd]]
    %v188 = vstv %s187
    %v189 = vmul.f32 %v188, %v66
    %v190 = vmul.f32 %v188, %v67
    %v191 = vmul.f32 %v188, %v68
    %v192 = vmul.f32 %v188, %v69
    %197 = vrot.lane.b32.xlu0 %v177, 32
    %v198 = vpop.permute.xlu0 %197
    %199 = vrot.lane.b32.xlu0 %v178, 32
    %v200 = vpop.permute.xlu0 %199
    %201 = vrot.lane.b32.xlu0 %v179, 32
    %v202 = vpop.permute.xlu0 %201
    %203 = vrot.lane.b32.xlu0 %v180, 32
    %v204 = vpop.permute.xlu0 %203
    %213 = vrot.lane.b32.xlu0 %v183, 64
    %v214 = vpop.permute.xlu0 %213
    %215 = vrot.lane.b32.xlu0 %v184, 64
    %v216 = vpop.permute.xlu0 %215
    %217 = vrot.lane.b32.xlu0 %v185, 64
    %v218 = vpop.permute.xlu0 %217
    %219 = vrot.lane.b32.xlu0 %v186, 64
    %v220 = vpop.permute.xlu0 %219
    %229 = vrot.lane.b32.xlu0 %v189, 96
    %v230 = vpop.permute.xlu0 %229
    %231 = vrot.lane.b32.xlu0 %v190, 96
    %v232 = vpop.permute.xlu0 %231
    %233 = vrot.lane.b32.xlu0 %v191, 96
    %v234 = vpop.permute.xlu0 %233
    %235 = vrot.lane.b32.xlu0 %v192, 96
    %v236 = vpop.permute.xlu0 %235
    %v241 = vsel %vm154, %v171, %v198
    %v242 = vsel %vm154, %v172, %v200
    %v243 = vsel %vm154, %v173, %v202
    %v244 = vsel %vm154, %v174, %v204
    %v245 = vsel %vm159, %v241, %v214
    %v246 = vsel %vm159, %v242, %v216
    %v247 = vsel %vm159, %v243, %v218
    %v248 = vsel %vm159, %v244, %v220
    %v249 = vsel %vm164, %v245, %v230
    %v250 = vsel %vm164, %v246, %v232
    %v251 = vsel %vm164, %v247, %v234
    %v252 = vsel %vm164, %v248, %v236
    %s253 = sld [smem:[#allocation2 + $0x2]]
    %v254 = vstv %s253
    %v255 = vmul.f32 %v254, %v66
    %v256 = vmul.f32 %v254, %v67
    %v257 = vmul.f32 %v254, %v68
    %v258 = vmul.f32 %v254, %v69
    %s259 = sld [smem:[#allocation2 + $0x6]]
    %v260 = vstv %s259
    %v261 = vmul.f32 %v260, %v66
    %v262 = vmul.f32 %v260, %v67
    %v263 = vmul.f32 %v260, %v68
    %v264 = vmul.f32 %v260, %v69
    %s265 = sld [smem:[#allocation2 + $0xa]]
    %v266 = vstv %s265
    %v267 = vmul.f32 %v266, %v66
    %v268 = vmul.f32 %v266, %v67
    %v269 = vmul.f32 %v266, %v68
    %v270 = vmul.f32 %v266, %v69
    %s271 = sld [smem:[#allocation2 + $0xe]]
    %v272 = vstv %s271
    %v273 = vmul.f32 %v272, %v66
    %v274 = vmul.f32 %v272, %v67
    %v275 = vmul.f32 %v272, %v68
    %v276 = vmul.f32 %v272, %v69
    %281 = vrot.lane.b32.xlu0 %v261, 32
    %v282 = vpop.permute.xlu0 %281
    %283 = vrot.lane.b32.xlu0 %v262, 32
    %v284 = vpop.permute.xlu0 %283
    %285 = vrot.lane.b32.xlu0 %v263, 32
    %v286 = vpop.permute.xlu0 %285
    %287 = vrot.lane.b32.xlu0 %v264, 32
    %v288 = vpop.permute.xlu0 %287
    %297 = vrot.lane.b32.xlu0 %v267, 64
    %v298 = vpop.permute.xlu0 %297
    %299 = vrot.lane.b32.xlu0 %v268, 64
    %v300 = vpop.permute.xlu0 %299
    %301 = vrot.lane.b32.xlu0 %v269, 64
    %v302 = vpop.permute.xlu0 %301
    %303 = vrot.lane.b32.xlu0 %v270, 64
    %v304 = vpop.permute.xlu0 %303
    %313 = vrot.lane.b32.xlu0 %v273, 96
    %v314 = vpop.permute.xlu0 %313
    %315 = vrot.lane.b32.xlu0 %v274, 96
    %v316 = vpop.permute.xlu0 %315
    %317 = vrot.lane.b32.xlu0 %v275, 96
    %v318 = vpop.permute.xlu0 %317
    %319 = vrot.lane.b32.xlu0 %v276, 96
    %v320 = vpop.permute.xlu0 %319
    %v325 = vsel %vm154, %v255, %v282
    %v326 = vsel %vm154, %v256, %v284
    %v327 = vsel %vm154, %v257, %v286
    %v328 = vsel %vm154, %v258, %v288
    %v329 = vsel %vm159, %v325, %v298
    %v330 = vsel %vm159, %v326, %v300
    %v331 = vsel %vm159, %v327, %v302
    %v332 = vsel %vm159, %v328, %v304
    %v333 = vsel %vm164, %v329, %v314
    %v334 = vsel %vm164, %v330, %v316
    %v335 = vsel %vm164, %v331, %v318
    %v336 = vsel %vm164, %v332, %v320
    %s337 = sld [smem:[#allocation2 + $0x3]]
    %v338 = vstv %s337
    %v339 = vmul.f32 %v338, %v66
    %v340 = vmul.f32 %v338, %v67
    %v341 = vmul.f32 %v338, %v68
    %v342 = vmul.f32 %v338, %v69
    %s343 = sld [smem:[#allocation2 + $0x7]]
    %v344 = vstv %s343
    %v345 = vmul.f32 %v344, %v66
    %v346 = vmul.f32 %v344, %v67
    %v347 = vmul.f32 %v344, %v68
    %v348 = vmul.f32 %v344, %v69
    %s349 = sld [smem:[#allocation2 + $0xb]]
    %v350 = vstv %s349
    %v351 = vmul.f32 %v350, %v66
    %v352 = vmul.f32 %v350, %v67
    %v353 = vmul.f32 %v350, %v68
    %v354 = vmul.f32 %v350, %v69
    %s355 = sld [smem:[#allocation2 + $0xf]]
    %v356 = vstv %s355
    %v357 = vmul.f32 %v356, %v66
    %v358 = vmul.f32 %v356, %v67
    %v359 = vmul.f32 %v356, %v68
    %v360 = vmul.f32 %v356, %v69
    %365 = vrot.lane.b32.xlu0 %v345, 32
    %v366 = vpop.permute.xlu0 %365
    %367 = vrot.lane.b32.xlu0 %v346, 32
    %v368 = vpop.permute.xlu0 %367
    %369 = vrot.lane.b32.xlu0 %v347, 32
    %v370 = vpop.permute.xlu0 %369
    %371 = vrot.lane.b32.xlu0 %v348, 32
    %v372 = vpop.permute.xlu0 %371
    %381 = vrot.lane.b32.xlu0 %v351, 64
    %v382 = vpop.permute.xlu0 %381
    %383 = vrot.lane.b32.xlu0 %v352, 64
    %v384 = vpop.permute.xlu0 %383
    %385 = vrot.lane.b32.xlu0 %v353, 64
    %v386 = vpop.permute.xlu0 %385
    %387 = vrot.lane.b32.xlu0 %v354, 64
    %v388 = vpop.permute.xlu0 %387
    %397 = vrot.lane.b32.xlu0 %v357, 96
    %v398 = vpop.permute.xlu0 %397
    %399 = vrot.lane.b32.xlu0 %v358, 96
    %v400 = vpop.permute.xlu0 %399
    %401 = vrot.lane.b32.xlu0 %v359, 96
    %v402 = vpop.permute.xlu0 %401
    %403 = vrot.lane.b32.xlu0 %v360, 96
    %v404 = vpop.permute.xlu0 %403
    %v409 = vsel %vm154, %v339, %v366
    %v410 = vsel %vm154, %v340, %v368
    %v411 = vsel %vm154, %v341, %v370
    %v412 = vsel %vm154, %v342, %v372
    %v413 = vsel %vm159, %v409, %v382
    %v414 = vsel %vm159, %v410, %v384
    %v415 = vsel %vm159, %v411, %v386
    %v416 = vsel %vm159, %v412, %v388
    %v417 = vsel %vm164, %v413, %v398
    %v418 = vsel %vm164, %v414, %v400
    %v419 = vsel %vm164, %v415, %v402
    %v420 = vsel %vm164, %v416, %v404
    %v421 = vpack.c.bf16 %v166, %v165
    %v422 = vpack.c.bf16 %v168, %v167
    %v423 = vpack.c.bf16 %v250, %v249
    %v424 = vpack.c.bf16 %v252, %v251
    %v425 = vpack.c.bf16 %v334, %v333
    %v426 = vpack.c.bf16 %v336, %v335
    %v427 = vpack.c.bf16 %v418, %v417
    %v428 = vpack.c.bf16 %v420, %v419
    %v429 = vld [vmem:[%s3] sm:$0x1]
    %v431 = vperm.slane %v429, 0
    %432 = vrot.lane.b32.xlu0 %v431, 32
    %v433 = vpop.permute.xlu0 %432
    %435 = vrot.lane.b32.xlu0 %v431, 64
    %v436 = vpop.permute.xlu0 %435
    %438 = vrot.lane.b32.xlu0 %v431, 96
    %v439 = vpop.permute.xlu0 %438
    %v441 = vsel %vm154, %v429, %v433
    %v442 = vsel %vm159, %v441, %v436
    %v443 = vsel %vm164, %v442, %v439
    %v444 = vld [vmem:[%s1] sm:$0x1]
    %v445 = vpack.c.bf16 %v444, %v444
    %446 = vmatpush.bf16.msra.mxu0 %v428
    %447 = vmatpush.bf16.msra.mxu0 %v427
    %448 = vmatpush.bf16.msra.mxu0 %v426
    %449 = vmatpush.bf16.msra.mxu0 %v425
    %450 = vmatpush.bf16.msra.mxu0 %v424
    %451 = vmatpush.bf16.msra.mxu0 %v423
    %452 = vmatpush.bf16.msra.mxu0 %v422
    %453 = vmatpush.bf16.msra.mxu0 %v421
    %454 = vmatmul.bf16.gmra.mxu0 %v445
    %v455 = vpop.f32.mrf.mxu0
    %v456 = vadd.f32 %v443, %v455
    %v457 = vpop.f32.mrf.mxu0
    %458 = vdwg.mxu0
    %v459 = vtanh.pop %v456
    %v460 = vmul.f32 %v459, 0.16666667
    %v461 = vadd.f32 %v444, %v460
    %v462 = vpack.c.bf16 %v461, %v461
    %463 = vmatpush.bf16.msra.mxu0 %v428
    %464 = vmatpush.bf16.msra.mxu0 %v427
    %465 = vmatpush.bf16.msra.mxu0 %v426
    %466 = vmatpush.bf16.msra.mxu0 %v425
    %467 = vmatpush.bf16.msra.mxu0 %v424
    %468 = vmatpush.bf16.msra.mxu0 %v423
    %469 = vmatpush.bf16.msra.mxu0 %v422
    %470 = vmatpush.bf16.msra.mxu0 %v421
    %471 = vmatmul.bf16.gmra.mxu0 %v462
    %v472 = vpop.f32.mrf.mxu0
    %v473 = vadd.f32 %v443, %v472
    %v474 = vpop.f32.mrf.mxu0
    %475 = vdwg.mxu0
    %v476 = vtanh.pop %v473
    %v477 = vmul.f32 %v476, 0.16666667
    %v478 = vadd.f32 %v444, %v477
    %v479 = vpack.c.bf16 %v478, %v478
    %480 = vmatpush.bf16.msra.mxu0 %v428
    %481 = vmatpush.bf16.msra.mxu0 %v427
    %482 = vmatpush.bf16.msra.mxu0 %v426
    %483 = vmatpush.bf16.msra.mxu0 %v425
    %484 = vmatpush.bf16.msra.mxu0 %v424
    %485 = vmatpush.bf16.msra.mxu0 %v423
    %486 = vmatpush.bf16.msra.mxu0 %v422
    %487 = vmatpush.bf16.msra.mxu0 %v421
    %488 = vmatmul.bf16.gmra.mxu0 %v479
    %v489 = vpop.f32.mrf.mxu0
    %v490 = vadd.f32 %v443, %v489
    %v491 = vpop.f32.mrf.mxu0
    %492 = vdwg.mxu0
    %v493 = vtanh.pop %v490
    %v494 = vmul.f32 %v493, 0.33333334
    %v495 = vadd.f32 %v444, %v494
    %v496 = vpack.c.bf16 %v495, %v495
    %497 = vmatpush.bf16.msra.mxu0 %v428
    %498 = vmatpush.bf16.msra.mxu0 %v427
    %499 = vmatpush.bf16.msra.mxu0 %v426
    %500 = vmatpush.bf16.msra.mxu0 %v425
    %501 = vmatpush.bf16.msra.mxu0 %v424
    %502 = vmatpush.bf16.msra.mxu0 %v423
    %503 = vmatpush.bf16.msra.mxu0 %v422
    %504 = vmatpush.bf16.msra.mxu0 %v421
    %505 = vmatmul.bf16.gmra.mxu0 %v496
    %v506 = vpop.f32.mrf.mxu0
    %v507 = vadd.f32 %v443, %v506
    %v508 = vpop.f32.mrf.mxu0
    %509 = vdwg.mxu0
    %v510 = vtanh.pop %v507
    %v511 = vmul.f32 %v476, 2.0
    %v512 = vadd.f32 %v459, %v511
    %v513 = vmul.f32 %v493, 2.0
    %v514 = vadd.f32 %v512, %v513
    %v515 = vadd.f32 %v514, %v510
    %v516 = vmul.f32 %v515, 0.055555556
    %v517 = vadd.f32 %v444, %v516
    %v518 = vpack.c.bf16 %v517, %v517
    %519 = vmatpush.bf16.msra.mxu0 %v428
    %520 = vmatpush.bf16.msra.mxu0 %v427
    %521 = vmatpush.bf16.msra.mxu0 %v426
    %522 = vmatpush.bf16.msra.mxu0 %v425
    %523 = vmatpush.bf16.msra.mxu0 %v424
    %524 = vmatpush.bf16.msra.mxu0 %v423
    %525 = vmatpush.bf16.msra.mxu0 %v422
    %526 = vmatpush.bf16.msra.mxu0 %v421
    %527 = vmatmul.bf16.gmra.mxu0 %v518
    %v528 = vpop.f32.mrf.mxu0
    %v529 = vadd.f32 %v443, %v528
    %v530 = vpop.f32.mrf.mxu0
    %531 = vdwg.mxu0
    %v532 = vtanh.pop %v529
    %v533 = vmul.f32 %v532, 0.16666667
    %v534 = vadd.f32 %v517, %v533
    %v535 = vpack.c.bf16 %v534, %v534
    %536 = vmatpush.bf16.msra.mxu0 %v428
    %537 = vmatpush.bf16.msra.mxu0 %v427
    %538 = vmatpush.bf16.msra.mxu0 %v426
    %539 = vmatpush.bf16.msra.mxu0 %v425
    %540 = vmatpush.bf16.msra.mxu0 %v424
    %541 = vmatpush.bf16.msra.mxu0 %v423
    %542 = vmatpush.bf16.msra.mxu0 %v422
    %543 = vmatpush.bf16.msra.mxu0 %v421
    %544 = vmatmul.bf16.gmra.mxu0 %v535
    %v545 = vpop.f32.mrf.mxu0
    %v546 = vadd.f32 %v443, %v545
    %v547 = vpop.f32.mrf.mxu0
    %548 = vdwg.mxu0
    %v549 = vtanh.pop %v546
    %v550 = vmul.f32 %v549, 0.16666667
    %v551 = vadd.f32 %v517, %v550
    %v552 = vpack.c.bf16 %v551, %v551
    %553 = vmatpush.bf16.msra.mxu0 %v428
    %554 = vmatpush.bf16.msra.mxu0 %v427
    %555 = vmatpush.bf16.msra.mxu0 %v426
    %556 = vmatpush.bf16.msra.mxu0 %v425
    %557 = vmatpush.bf16.msra.mxu0 %v424
    %558 = vmatpush.bf16.msra.mxu0 %v423
    %559 = vmatpush.bf16.msra.mxu0 %v422
    %560 = vmatpush.bf16.msra.mxu0 %v421
    %561 = vmatmul.bf16.gmra.mxu0 %v552
    %v562 = vpop.f32.mrf.mxu0
    %v563 = vadd.f32 %v443, %v562
    %v564 = vpop.f32.mrf.mxu0
    %565 = vdwg.mxu0
    %v566 = vtanh.pop %v563
    %v567 = vmul.f32 %v566, 0.33333334
    %v568 = vadd.f32 %v517, %v567
    %v569 = vpack.c.bf16 %v568, %v568
    %570 = vmatpush.bf16.msra.mxu0 %v428
    %571 = vmatpush.bf16.msra.mxu0 %v427
    %572 = vmatpush.bf16.msra.mxu0 %v426
    %573 = vmatpush.bf16.msra.mxu0 %v425
    %574 = vmatpush.bf16.msra.mxu0 %v424
    %575 = vmatpush.bf16.msra.mxu0 %v423
    %576 = vmatpush.bf16.msra.mxu0 %v422
    %577 = vmatpush.bf16.msra.mxu0 %v421
    %578 = vmatmul.bf16.gmra.mxu0 %v569
    %v579 = vpop.f32.mrf.mxu0
    %v580 = vadd.f32 %v443, %v579
    %v581 = vpop.f32.mrf.mxu0
    %582 = vdwg.mxu0
    %v583 = vtanh.pop %v580
    %v584 = vmul.f32 %v549, 2.0
    %v585 = vadd.f32 %v532, %v584
    %v586 = vmul.f32 %v566, 2.0
    %v587 = vadd.f32 %v585, %v586
    %v588 = vadd.f32 %v587, %v583
    %v589 = vmul.f32 %v588, 0.055555556
    %v590 = vadd.f32 %v517, %v589
    %v591 = vpack.c.bf16 %v590, %v590
    %592 = vmatpush.bf16.msra.mxu0 %v428
    %593 = vmatpush.bf16.msra.mxu0 %v427
    %594 = vmatpush.bf16.msra.mxu0 %v426
    %595 = vmatpush.bf16.msra.mxu0 %v425
    %596 = vmatpush.bf16.msra.mxu0 %v424
    %597 = vmatpush.bf16.msra.mxu0 %v423
    %598 = vmatpush.bf16.msra.mxu0 %v422
    %599 = vmatpush.bf16.msra.mxu0 %v421
    %600 = vmatmul.bf16.gmra.mxu0 %v591
    %v601 = vpop.f32.mrf.mxu0
    %v602 = vadd.f32 %v443, %v601
    %v603 = vpop.f32.mrf.mxu0
    %604 = vdwg.mxu0
    %v605 = vtanh.pop %v602
    %v606 = vmul.f32 %v605, 0.16666667
    %v607 = vadd.f32 %v590, %v606
    %v608 = vpack.c.bf16 %v607, %v607
    %609 = vmatpush.bf16.msra.mxu0 %v428
    %610 = vmatpush.bf16.msra.mxu0 %v427
    %611 = vmatpush.bf16.msra.mxu0 %v426
    %612 = vmatpush.bf16.msra.mxu0 %v425
    %613 = vmatpush.bf16.msra.mxu0 %v424
    %614 = vmatpush.bf16.msra.mxu0 %v423
    %615 = vmatpush.bf16.msra.mxu0 %v422
    %616 = vmatpush.bf16.msra.mxu0 %v421
    %617 = vmatmul.bf16.gmra.mxu0 %v608
    %v618 = vpop.f32.mrf.mxu0
    %v619 = vadd.f32 %v443, %v618
    %v620 = vpop.f32.mrf.mxu0
    %621 = vdwg.mxu0
    %v622 = vtanh.pop %v619
    %v623 = vmul.f32 %v622, 0.16666667
    %v624 = vadd.f32 %v590, %v623
    %v625 = vpack.c.bf16 %v624, %v624
    %626 = vmatpush.bf16.msra.mxu0 %v428
    %627 = vmatpush.bf16.msra.mxu0 %v427
    %628 = vmatpush.bf16.msra.mxu0 %v426
    %629 = vmatpush.bf16.msra.mxu0 %v425
    %630 = vmatpush.bf16.msra.mxu0 %v424
    %631 = vmatpush.bf16.msra.mxu0 %v423
    %632 = vmatpush.bf16.msra.mxu0 %v422
    %633 = vmatpush.bf16.msra.mxu0 %v421
    %634 = vmatmul.bf16.gmra.mxu0 %v625
    %v635 = vpop.f32.mrf.mxu0
    %v636 = vadd.f32 %v443, %v635
    %v637 = vpop.f32.mrf.mxu0
    %638 = vdwg.mxu0
    %v639 = vtanh.pop %v636
    %v640 = vmul.f32 %v639, 0.33333334
    %v641 = vadd.f32 %v590, %v640
    %v642 = vpack.c.bf16 %v641, %v641
    %643 = vmatpush.bf16.msra.mxu0 %v428
    %644 = vmatpush.bf16.msra.mxu0 %v427
    %645 = vmatpush.bf16.msra.mxu0 %v426
    %646 = vmatpush.bf16.msra.mxu0 %v425
    %647 = vmatpush.bf16.msra.mxu0 %v424
    %648 = vmatpush.bf16.msra.mxu0 %v423
    %649 = vmatpush.bf16.msra.mxu0 %v422
    %650 = vmatpush.bf16.msra.mxu0 %v421
    %651 = vmatmul.bf16.gmra.mxu0 %v642
    %v652 = vpop.f32.mrf.mxu0
    %v653 = vadd.f32 %v443, %v652
    %v654 = vpop.f32.mrf.mxu0
    %655 = vdwg.mxu0
    %v656 = vtanh.pop %v653
    %v657 = vmul.f32 %v622, 2.0
    %v658 = vadd.f32 %v605, %v657
    %v659 = vmul.f32 %v639, 2.0
    %v660 = vadd.f32 %v658, %v659
    %v661 = vadd.f32 %v660, %v656
    %v662 = vmul.f32 %v661, 0.055555556
    %v663 = vadd.f32 %v590, %v662
    %664 = vst [vmem:[%s4] sm:$0x1] %v663
    // Predicated region
    $region26: #{v1_graph_ode_forward.1} parent=1 // pred_check
      _
    $region27: #{v1_graph_ode_forward.1} parent=1 // pred_check_branch
      %666 = sbr.rel (0) target = $region29
    $region28: #{v1_graph_ode_forward.1} parent=1 // pred_region
      _
    $region29: #{v1_graph_ode_forward.1} parent=1 // pred_fallthru
      _
    // Predicated region
    $region30: #{v1_graph_ode_forward.1} parent=1 // pred_check
      _
    $region31: #{v1_graph_ode_forward.1} parent=1 // pred_check_branch
      %668 = sbr.rel (0) target = $region33
    $region32: #{v1_graph_ode_forward.1} parent=1 // pred_region
      _
    $region33: #{v1_graph_ode_forward.1} parent=1 // pred_fallthru
      _
    %669 = vsyncpa [#allocation3], 1
    %670 = vsyncpa [#allocation4], 1

</llo_original>
